<compile_context>
chip_gen: v7x
topology: tpu7x:2x2x1
jax: 0.10.0
libtpu: 0.0.40
codegen_flags: <defaults>
</compile_context>

<pallas_src>
import jax
import jax.numpy as jnp
from jax.experimental import pallas as pl
from jax.experimental.pallas import tpu as pltpu

IN_FEATURES = 2
HIDDEN = 50
OUT_FEATURES = 1
LANE = 128          # TPU lane width; packed slab lane dimension
N_VEC = 4           # packed parameter vectors: w1 col0, w1 col1, b1, (w2 row | b2)


def bnn_forward_kernel(x_ref, p_ref, y_ref, kl_ref):
    x = x_ref[...]                      # (B, IN_FEATURES)

    mu = p_ref[0:N_VEC, :]              # (4, 128)
    lv = p_ref[N_VEC:2 * N_VEC, :]      # (4, 128)
    ep = p_ref[2 * N_VEC:3 * N_VEC, :]  # (4, 128)

    # Reparameterization trick: one exp over the whole slab, std reused for var.
    std = jnp.exp(0.5 * lv)
    smp = mu + std * ep                 # sampled [w1c0, w1c1, b1, w2|b2]
    var = std * std                     # == exp(logvar), no second exp

    # KL( N(mu, std) || N(0,1) ) elementwise; zero-padded lanes contribute exactly 0.
    kl_e = 0.5 * (mu * mu + var - lv - 1.0)
    kl_ref[0] = jnp.sum(kl_e[0:3, :])   # layer 1: W1 + b1
    kl_ref[1] = jnp.sum(kl_e[3:4, :])   # layer 2: W2 + b2 (b2 sits at lane HIDDEN)

    w1c0 = smp[0:1, :]                  # (1, 128) sampled W1[:, 0] (lanes >= 50 are 0)
    w1c1 = smp[1:2, :]                  # (1, 128) sampled W1[:, 1]
    b1 = smp[2:3, :]                    # (1, 128) sampled b1
    w2 = smp[3:4, :]                    # (1, 128) sampled W2 row; lane 50 = sampled b2
    b2 = smp[3:4, HIDDEN:HIDDEN + 1]    # (1, 1)   sampled b2

    # Layer 1 (K = 2): two VPU broadcast-FMAs instead of an MXU matmul.
    h = x[:, 0:1] * w1c0 + x[:, 1:2] * w1c1 + b1        # (B, 128)
    h = jnp.maximum(h, 0.0)                             # padded lanes stay 0

    # Layer 2 (N = 1): lane reduction (XLU) instead of an MXU matmul.
    # h is exactly 0 at lane HIDDEN, so the b2 slot stored inside `w2` is inert here.
    y = jnp.sum(h * w2, axis=-1, keepdims=True) + b2    # (B, 1)

    # Lane-dense store: broadcast across all 128 lanes -> unmasked vst; the wrapper
    # keeps column 0.
    y_ref[...] = jnp.broadcast_to(y, y_ref.shape).astype(y_ref.dtype)


def _pad_row(v):
    v = jnp.asarray(v, jnp.float32).reshape(-1)
    return jnp.zeros((LANE,), jnp.float32).at[: v.shape[0]].set(v)


def pack_inputs(params, eps):
    """Pack all mu / logvar / eps vectors into a single (12, 128) f32 slab."""
    def vecs(w1, b1, w2, b2):
        return [w1[:, 0], w1[:, 1], b1, jnp.concatenate([w2[0, :], b2])]

    rows = (
        vecs(params["w1_mu"], params["b1_mu"], params["w2_mu"], params["b2_mu"])
        + vecs(params["w1_logvar"], params["b1_logvar"],
               params["w2_logvar"], params["b2_logvar"])
        + vecs(eps["w1"], eps["b1"], eps["w2"], eps["b2"])
    )
    return jnp.stack([_pad_row(r) for r in rows], axis=0)   # (12, 128)


def bayesian_nn_forward(x, params, eps):
    """x: (B, 2) f32.  params / eps: dicts of f32 arrays in PyTorch-native shapes.

    Returns (y, kl) with y: (B, 1) and kl: (2,) = [kl_layer1, kl_layer2]."""
    B = x.shape[0]
    packed = pack_inputs(params, eps)            # (12, 128) -- one DMA
    x = x.astype(jnp.float32)

    vmem = pl.BlockSpec(memory_space=pltpu.MemorySpace.VMEM)
    smem = pl.BlockSpec(memory_space=pltpu.MemorySpace.SMEM)

    y_full, kl = pl.pallas_call(
        bnn_forward_kernel,
        out_shape=(
            jax.ShapeDtypeStruct((B, LANE), jnp.float32),   # lane-dense y tile
            jax.ShapeDtypeStruct((2,), jnp.float32),        # [kl1, kl2] in SMEM
        ),
        in_specs=[vmem, vmem],
        out_specs=(vmem, smem),
    )(x, packed)
    return y_full[:, :OUT_FEATURES], kl


def make_params(key):
    """Deterministic parameter init, PyTorch-native shapes (weight: (out, in)).
    The module's __init__ uses zeros; small random values exercise the full
    sampling / KL math."""
    ks = jax.random.split(key, 8)
    s = 0.1
    return {
        "w1_mu":     s * jax.random.normal(ks[0], (HIDDEN, IN_FEATURES), jnp.float32),
        "w1_logvar": s * jax.random.normal(ks[1], (HIDDEN, IN_FEATURES), jnp.float32),
        "b1_mu":     s * jax.random.normal(ks[2], (HIDDEN,), jnp.float32),
        "b1_logvar": s * jax.random.normal(ks[3], (HIDDEN,), jnp.float32),
        "w2_mu":     s * jax.random.normal(ks[4], (OUT_FEATURES, HIDDEN), jnp.float32),
        "w2_logvar": s * jax.random.normal(ks[5], (OUT_FEATURES, HIDDEN), jnp.float32),
        "b2_mu":     s * jax.random.normal(ks[6], (OUT_FEATURES,), jnp.float32),
        "b2_logvar": s * jax.random.normal(ks[7], (OUT_FEATURES,), jnp.float32),
    }


def make_eps(key):
    """Deterministic standard-normal noise for the reparameterization trick."""
    ks = jax.random.split(key, 4)
    return {
        "w1": jax.random.normal(ks[0], (HIDDEN, IN_FEATURES), jnp.float32),
        "b1": jax.random.normal(ks[1], (HIDDEN,), jnp.float32),
        "w2": jax.random.normal(ks[2], (OUT_FEATURES, HIDDEN), jnp.float32),
        "b2": jax.random.normal(ks[3], (OUT_FEATURES,), jnp.float32),
    }


def reference_forward(x, p, e):
    """Pure-JAX reference of the PyTorch forward (same math, same noise)."""
    w1 = p["w1_mu"] + jnp.exp(0.5 * p["w1_logvar"]) * e["w1"]
    b1 = p["b1_mu"] + jnp.exp(0.5 * p["b1_logvar"]) * e["b1"]
    w2 = p["w2_mu"] + jnp.exp(0.5 * p["w2_logvar"]) * e["w2"]
    b2 = p["b2_mu"] + jnp.exp(0.5 * p["b2_logvar"]) * e["b2"]
    h = jnp.maximum(x @ w1.T + b1, 0.0)
    y = h @ w2.T + b2

    def kl(mu, lvar):
        return jnp.sum(0.5 * (mu * mu + jnp.exp(lvar) - lvar - 1.0))

    kl1 = kl(p["w1_mu"], p["w1_logvar"]) + kl(p["b1_mu"], p["b1_logvar"])
    kl2 = kl(p["w2_mu"], p["w2_logvar"]) + kl(p["b2_mu"], p["b2_logvar"])
    return y, jnp.stack([kl1, kl2])


if __name__ == "__main__":
    key = jax.random.PRNGKey(0)
    k_x, k_p, k_e = jax.random.split(key, 3)

    batch = 8
    x = jax.random.normal(k_x, (batch, IN_FEATURES), jnp.float32)
    params = make_params(k_p)
    eps = make_eps(k_e)

    y, kl = bayesian_nn_forward(x, params, eps)
    y = jax.block_until_ready(y)
    kl = jax.block_until_ready(kl)

    y_ref, kl_ref = reference_forward(x, params, eps)
    assert y.shape == (batch, OUT_FEATURES)
    assert kl.shape == (2,)
    assert jnp.allclose(y, y_ref, atol=1e-5, rtol=1e-5), (y, y_ref)
    assert jnp.allclose(kl, kl_ref, atol=1e-5, rtol=1e-5), (kl, kl_ref)

    print("KERNEL_OK")
</pallas_src>

<mosaic_0001>
module attributes {stable_mosaic.version = 11 : i64} {
  func.func @bnn_forward_kernel(%arg0: memref<8x2xf32, #tpu.memory_space<vmem>>, %arg1: memref<12x128xf32, #tpu.memory_space<vmem>>, %arg2: memref<8x128xf32, #tpu.memory_space<vmem>>, %arg3: memref<2xf32, #tpu.memory_space<smem>>) attributes {dimension_semantics = [], scalar_prefetch = 0 : i64, scratch_operands = 0 : i64, tpu.core_type = #tpu.core_type<tc>} {
    %c0 = arith.constant 0 : index
    %c0_0 = arith.constant 0 : index
    %0 = vector.load %arg0[%c0, %c0_0] : memref<8x2xf32, #tpu.memory_space<vmem>>, vector<8x2xf32>
    %c0_1 = arith.constant 0 : index
    %c0_2 = arith.constant 0 : index
    %1 = vector.load %arg1[%c0_1, %c0_2] : memref<12x128xf32, #tpu.memory_space<vmem>>, vector<4x128xf32>
    %c4 = arith.constant 4 : index
    %c0_3 = arith.constant 0 : index
    %2 = vector.load %arg1[%c4, %c0_3] : memref<12x128xf32, #tpu.memory_space<vmem>>, vector<4x128xf32>
    %c8 = arith.constant 8 : index
    %c0_4 = arith.constant 0 : index
    %3 = vector.load %arg1[%c8, %c0_4] : memref<12x128xf32, #tpu.memory_space<vmem>>, vector<4x128xf32>
    %cst = arith.constant 5.000000e-01 : f32
    %4 = vector.broadcast %cst : f32 to vector<4x128xf32>
    %5 = arith.mulf %4, %2 : vector<4x128xf32>
    %6 = math.exp %5 : vector<4x128xf32>
    %7 = arith.mulf %6, %3 : vector<4x128xf32>
    %8 = arith.addf %1, %7 : vector<4x128xf32>
    %9 = arith.mulf %6, %6 : vector<4x128xf32>
    %10 = arith.mulf %1, %1 : vector<4x128xf32>
    %11 = arith.addf %10, %9 : vector<4x128xf32>
    %12 = arith.subf %11, %2 : vector<4x128xf32>
    %cst_5 = arith.constant 1.000000e+00 : f32
    %13 = vector.broadcast %cst_5 : f32 to vector<4x128xf32>
    %14 = arith.subf %12, %13 : vector<4x128xf32>
    %cst_6 = arith.constant 5.000000e-01 : f32
    %15 = vector.broadcast %cst_6 : f32 to vector<4x128xf32>
    %16 = arith.mulf %15, %14 : vector<4x128xf32>
    %17 = vector.extract_strided_slice %16 {offsets = [0, 0], sizes = [3, 128], strides = [1, 1]} : vector<4x128xf32> to vector<3x128xf32>
    %18 = vector.shape_cast %17 : vector<3x128xf32> to vector<1x3x128xf32>
    %cst_7 = arith.constant dense<0.000000e+00> : vector<1xf32>
    %19 = vector.multi_reduction <add>, %18, %cst_7 [1, 2] : vector<1x3x128xf32> to vector<1xf32>
    %20 = vector.shape_cast %19 : vector<1xf32> to vector<1x1x1xf32>
    %21 = vector.extract %20[0, 0, 0] : f32 from vector<1x1x1xf32>
    %c0_8 = arith.constant 0 : index
    %22 = memref.load %arg3[%c0_8] : memref<2xf32, #tpu.memory_space<smem>>
    memref.store %21, %arg3[%c0_8] : memref<2xf32, #tpu.memory_space<smem>>
    %23 = vector.extract_strided_slice %16 {offsets = [3, 0], sizes = [1, 128], strides = [1, 1]} : vector<4x128xf32> to vector<1x128xf32>
    %24 = vector.shape_cast %23 : vector<1x128xf32> to vector<1x1x128xf32>
    %cst_9 = arith.constant dense<0.000000e+00> : vector<1xf32>
    %25 = vector.multi_reduction <add>, %24, %cst_9 [1, 2] : vector<1x1x128xf32> to vector<1xf32>
    %26 = vector.shape_cast %25 : vector<1xf32> to vector<1x1x1xf32>
    %27 = vector.extract %26[0, 0, 0] : f32 from vector<1x1x1xf32>
    %c1 = arith.constant 1 : index
    %28 = memref.load %arg3[%c1] : memref<2xf32, #tpu.memory_space<smem>>
    memref.store %27, %arg3[%c1] : memref<2xf32, #tpu.memory_space<smem>>
    %29 = vector.extract_strided_slice %8 {offsets = [0, 0], sizes = [1, 128], strides = [1, 1]} : vector<4x128xf32> to vector<1x128xf32>
    %30 = vector.extract_strided_slice %8 {offsets = [1, 0], sizes = [1, 128], strides = [1, 1]} : vector<4x128xf32> to vector<1x128xf32>
    %31 = vector.extract_strided_slice %8 {offsets = [2, 0], sizes = [1, 128], strides = [1, 1]} : vector<4x128xf32> to vector<1x128xf32>
    %32 = vector.extract_strided_slice %8 {offsets = [3, 0], sizes = [1, 128], strides = [1, 1]} : vector<4x128xf32> to vector<1x128xf32>
    %33 = vector.extract_strided_slice %8 {offsets = [3, 50], sizes = [1, 1], strides = [1, 1]} : vector<4x128xf32> to vector<1x1xf32>
    %34 = vector.extract_strided_slice %0 {offsets = [0, 0], sizes = [8, 1], strides = [1, 1]} : vector<8x2xf32> to vector<8x1xf32>
    %35 = vector.broadcast %34 : vector<8x1xf32> to vector<8x128xf32>
    %36 = vector.broadcast %29 : vector<1x128xf32> to vector<8x128xf32>
    %37 = arith.mulf %35, %36 : vector<8x128xf32>
    %38 = vector.extract_strided_slice %0 {offsets = [0, 1], sizes = [8, 1], strides = [1, 1]} : vector<8x2xf32> to vector<8x1xf32>
    %39 = vector.broadcast %38 : vector<8x1xf32> to vector<8x128xf32>
    %40 = vector.broadcast %30 : vector<1x128xf32> to vector<8x128xf32>
    %41 = arith.mulf %39, %40 : vector<8x128xf32>
    %42 = arith.addf %37, %41 : vector<8x128xf32>
    %43 = vector.broadcast %31 : vector<1x128xf32> to vector<8x128xf32>
    %44 = arith.addf %42, %43 : vector<8x128xf32>
    %cst_10 = arith.constant 0.000000e+00 : f32
    %45 = vector.broadcast %cst_10 : f32 to vector<8x128xf32>
    %46 = arith.maximumf %44, %45 : vector<8x128xf32>
    %47 = vector.broadcast %32 : vector<1x128xf32> to vector<8x128xf32>
    %48 = arith.mulf %46, %47 : vector<8x128xf32>
    %cst_11 = arith.constant dense<0.000000e+00> : vector<8xf32>
    %49 = vector.multi_reduction <add>, %48, %cst_11 [1] : vector<8x128xf32> to vector<8xf32>
    %50 = vector.shape_cast %49 : vector<8xf32> to vector<8x1xf32>
    %51 = vector.broadcast %33 : vector<1x1xf32> to vector<8x1xf32>
    %52 = arith.addf %50, %51 : vector<8x1xf32>
    %53 = vector.shape_cast %52 : vector<8x1xf32> to vector<8x1xf32>
    %54 = vector.broadcast %53 : vector<8x1xf32> to vector<8x128xf32>
    %c0_12 = arith.constant 0 : index
    %c0_13 = arith.constant 0 : index
    %55 = vector.load %arg2[%c0_12, %c0_13] : memref<8x128xf32, #tpu.memory_space<vmem>>, vector<8x128xf32>
    tpu.vector_store %arg2[%c0_12, %c0_13], %54 {strides = array<i32>} : memref<8x128xf32, #tpu.memory_space<vmem>>, vector<8x128xf32>,
    return
  }
}

</mosaic_0001>

<llo_original>
// kernel: tpu_custom_call.1
$region0: #{tpu_custom_call.1}
  #allocation0 [shape = 'u32[]', space=smem, size = 0x4, offset = 0x4, fixed_abs, tag = 'smem constant byte address 0x4 - core index']
  #allocation1 [shape = 'u32[144,128]{1,0:T(1,128)}', space=vmem, size = 0x12000, scoped, tag = 'internal scratch']
  %s0 = inlined_call_operand.vmem [shape: f32[8,2], index: 0, kind: input, shape index: {}]
  %s1 = inlined_call_operand.hbm [shape: f32[12,128], index: 1, kind: input, shape index: {}]
  %s2 = inlined_call_operand.hbm [shape: f32[8,128], index: 2, kind: output, shape index: {0}]
  %s3 = inlined_call_operand.hbm [shape: f32[2], index: 3, kind: output, shape index: {1}]
  %4 = xla_tuple %s2, %s3
  %s5 = sld [smem:[#allocation0]]
  $region30: #{tpu_custom_call.1} parent=0
    _
  %s7 = ssub.s32 1, %s5
  %s8 = scalar_select 0, %s7, %s5
  $region1: #{tpu_custom_call.1} parent=0
    #allocation2 [shape = 'u8[8192]{0}', space=vmem, size = 0x2000, scoped, tag = 'input window, operand 1, single buffered']
    #allocation3 [shape = 's32[1]{0}', space=sflag, size = 0x4, scoped, tag = 'scoped memory for tpu_custom_call.1']
    #allocation4 [shape = 's32[1]{0}', space=sflag, size = 0x4, scoped, tag = 'scoped memory for tpu_custom_call.1']
    #allocation5 [shape = 's32[1]{0}', space=sflag, size = 0x4, scoped, tag = 'scoped memory for tpu_custom_call.1']
    #allocation6 [shape = 'u8[4096]{0}', space=vmem, size = 0x1000, scoped, tag = 'output window, operand 0, single buffered']
    #allocation7 [shape = 'u8[512]{0}', space=smem, size = 0x200, scoped, tag = 'output window, operand 1, single buffered']
    %9 = vsyncpa [#allocation3], 0
    %10 = vsyncpa [#allocation4], 0
    %11 = vsyncpa [#allocation5], 0
    // Predicated region
    $region2: #{tpu_custom_call.1} parent=1 // pred_check
      _
    $region3: #{tpu_custom_call.1} parent=1 // pred_check_branch
      %13 = sbr.rel (0) target = $region5
    $region4: #{tpu_custom_call.1} parent=1 // pred_region
      _
    $region5: #{tpu_custom_call.1} parent=1 // pred_fallthru
      _
    // Predicated region
    $region6: #{tpu_custom_call.1} parent=1 // pred_check
      _
    $region7: #{tpu_custom_call.1} parent=1 // pred_check_branch
      %15 = sbr.rel (0) target = $region9
    $region8: #{tpu_custom_call.1} parent=1 // pred_region
      %s17 = ssub.s32 256, 256
      %18 = vsyncadd [#allocation3], %s17
      %s19 = sshll.u32 [#allocation2], 4
      %s20 = int_to_ptr.vmem [resolvable:$true] %s19
      %25 = dma.hbm_to_vmem [thread:$0]  %s1, 256, %s20, [#allocation3], 128, 128, 8
    $region9: #{tpu_custom_call.1} parent=1 // pred_fallthru
      _
    // Predicated region
    $region10: #{tpu_custom_call.1} parent=1 // pred_check
      _
    $region11: #{tpu_custom_call.1} parent=1 // pred_check_branch
      %27 = sbr.rel (0) target = $region13
    $region12: #{tpu_custom_call.1} parent=1 // pred_region
      %28 = dma.done [#allocation3], 256
    $region13: #{tpu_custom_call.1} parent=1 // pred_fallthru
      _
    %v29 = vld [vmem:[%s0] sm:$0xff]
    %v30 = vld [vmem:[#allocation2] sm:$0xf]
    %v31 = vld [vmem:[#allocation2 + $0x4] sm:$0xf]
    %v32 = vld [vmem:[#allocation2 + $0x8] sm:$0xf]
    %v33 = vmul.f32 %v31, 0.5
    %v34 = vmul.f32 %v33, 1.442695
    %v35 = vpow.pop %v34
    %v36 = vmul.f32 %v35, %v32
    %v37 = vadd.f32 %v30, %v36
    %v38 = vmul.f32 %v35, %v35
    %v39 = vmul.f32 %v30, %v30
    %v40 = vadd.f32 %v39, %v38
    %v41 = vsub.f32 %v40, %v31
    %v42 = vsub.f32 %v41, 1.0
    %v43 = vmul.f32 %v42, 0.5
    %vm44 = vcmask 1042432
    %v45 = vsel %vm44, %v43, 0.0
    %46 = vadd.xlane.f32.xlu0 %v45
    %v47 = vpop.xlane.xlu0 %46
    %v48 = vrot.slane %v47, 4
    %v49 = vadd.f32 %v47, %v48
    %v50 = vrot.slane %v49, 2
    %v51 = vadd.f32 %v49, %v50
    %v52 = vrot.slane %v51, 1
    %v53 = vadd.f32 %v51, %v52
    %s54 = vtos %v53
    %s55 = scalar_lea.smem [#allocation7], 0
    %56 = sst [smem:[%s55]] %s54
    %v58 = vrot.slane %v43, 3
    %vm60 = vcmask 1040384
    %v61 = vsel %vm60, %v58, 0.0
    %62 = vadd.xlane.f32.xlu0 %v61
    %v63 = vpop.xlane.xlu0 %62
    %v64 = vrot.slane %v63, 4
    %v65 = vadd.f32 %v63, %v64
    %v66 = vrot.slane %v65, 2
    %v67 = vadd.f32 %v65, %v66
    %v68 = vrot.slane %v67, 1
    %v69 = vadd.f32 %v67, %v68
    %s70 = vtos %v69
    %s71 = scalar_lea.smem [#allocation7], 1
    %72 = sst [smem:[%s71]] %s70
    %74 = vset.pattern.permute.xlu0 0
    %75 = vperm.xlu0 %74, %v29
    %v76 = vpop.permute.xlu0 %75
    %v78 = vlaneseq
    %v79 = vshrl.u32 %v78, 7
    %v80 = vsub.s32 0, %v79
    %v81 = vrot.slane %v37, %v80
    %v82 = vmul.f32 %v76, %v81
    %83 = vset.pattern.permute.xlu0 1
    %84 = vperm.xlu0 %83, %v29
    %v85 = vpop.permute.xlu0 %84
    %v87 = vlaneseq
    %v88 = vshrl.u32 %v87, 7
    %v89 = vsub.s32 1, %v88
    %v90 = vrot.slane %v37, %v89
    %v91 = vmul.f32 %v85, %v90
    %v92 = vadd.f32 %v82, %v91
    %v93 = vlaneseq
    %v94 = vshrl.u32 %v93, 7
    %v95 = vsub.s32 2, %v94
    %v96 = vrot.slane %v37, %v95
    %v97 = vadd.f32 %v92, %v96
    %v98 = vmax.f32 %v97, 0.0
    %v99 = vlaneseq
    %v100 = vshrl.u32 %v99, 7
    %v101 = vsub.s32 3, %v100
    %v102 = vrot.slane %v37, %v101
    %v103 = vmul.f32 %v98, %v102
    %104 = vadd.xlane.f32.xlu0 %v103
    %v105 = vpop.xlane.xlu0 %104
    %v106 = vadd.f32 %v105, %v102
    %108 = vset.pattern.permute.xlu0 50
    %109 = vperm.xlu0 %108, %v106
    %v110 = vpop.permute.xlu0 %109
    %112 = vst [vmem:[#allocation6] sm:$0xff] %v110
    // Predicated region
    $region14: #{tpu_custom_call.1} parent=1 // pred_check
      _
    $region15: #{tpu_custom_call.1} parent=1 // pred_check_branch
      %114 = sbr.rel (0) target = $region17
    $region16: #{tpu_custom_call.1} parent=1 // pred_region
      %s116 = ssub.s32 128, 128
      %117 = vsyncadd [#allocation4], %s116
      %s119 = sshll.u32 [#allocation6], 4
      %s120 = int_to_ptr.vmem [resolvable:$true] %s119
      %122 = dma.vmem_to_hbm [thread:$0]  %s120, 128, %s2, [#allocation4]
    $region17: #{tpu_custom_call.1} parent=1 // pred_fallthru
      _
    // Predicated region
    $region18: #{tpu_custom_call.1} parent=1 // pred_check
      _
    $region19: #{tpu_custom_call.1} parent=1 // pred_check_branch
      %124 = sbr.rel (0) target = $region21
    $region20: #{tpu_custom_call.1} parent=1 // pred_region
      %s126 = ssub.s32 16, 16
      %127 = vsyncadd [#allocation5], %s126
      %130 = dma.smem_to_hbm [#allocation7], 16, %s3, [#allocation5]
    $region21: #{tpu_custom_call.1} parent=1 // pred_fallthru
      _
    // Predicated region
    $region22: #{tpu_custom_call.1} parent=1 // pred_check
      _
    $region23: #{tpu_custom_call.1} parent=1 // pred_check_branch
      %132 = sbr.rel (0) target = $region25
    $region24: #{tpu_custom_call.1} parent=1 // pred_region
      %133 = dma.done [#allocation4], 128
    $region25: #{tpu_custom_call.1} parent=1 // pred_fallthru
      _
    // Predicated region
    $region26: #{tpu_custom_call.1} parent=1 // pred_check
      _
    $region27: #{tpu_custom_call.1} parent=1 // pred_check_branch
      %135 = sbr.rel (0) target = $region29
    $region28: #{tpu_custom_call.1} parent=1 // pred_region
      %136 = dma.done [#allocation5], 16
    $region29: #{tpu_custom_call.1} parent=1 // pred_fallthru
      _
    %137 = sfence
    %138 = vsyncpa [#allocation3], 1
    %139 = vsyncpa [#allocation4], 1
    %140 = vsyncpa [#allocation5], 1

</llo_original>
